<compile_context>
chip_gen: v5e
topology: v5e:2x2
jax: 0.10.0
libtpu: 0.0.40
codegen_flags: <defaults>
</compile_context>

<pallas_src>
import math

import jax
import jax.numpy as jnp
from jax.experimental import pallas as pl
from jax.experimental.pallas import tpu as pltpu

IN_SIZE = 2
LAYERS = [20, 20, 10]
OUT_SIZE = 1
NEG_SLOPE = 0.01          # torch.nn.functional.leaky_relu default
LANE = 128
MAX_BATCH_TILE = 8192     # big tiles amortize per-step overhead; tiny VMEM use
TARGET_STEPS = 4          # >= 2 steps per TensorCore on v7x, even count

# ---------------------------------------------------------------------------
# Packed parameter buffer layout (single VMEM-resident (P_ROWS, P_COLS) f32):
#   w0  : [ 0:20,  0: 2]   (20, 2)
#   b0  : [ 0:20,  2: 3]   (20, 1)
#   w1  : [24:44,  0:20]   (20, 20)
#   b1  : [24:44, 20:21]   (20, 1)
#   w2  : [48:58,  0:20]   (10, 20)
#   b2  : [48:58, 20:21]   (10, 1)
#   w3t : [64:74,  0: 1]   (10, 1)   (= w3.T)
#   b3  : [64:65,  1: 2]   (1, 1)
# Row segments start on 8-sublane boundaries.
# ---------------------------------------------------------------------------
P_ROWS, P_COLS = 80, 32


def _leaky_relu(v):
    return jnp.where(v >= 0, v, NEG_SLOPE * v)


def mlp_kernel(x_ref, p_ref, o_ref):
    # Lane-dense, transposed layout: activations are (features, batch_tile).
    x = x_ref[...]                                      # (2, TB)

    # Layer 0 (K=2): two VPU fused multiply-adds -- no MXU push/pop latency.
    w0 = p_ref[0:20, 0:2]                               # (20, 2)
    b0 = p_ref[0:20, 2:3]                               # (20, 1)
    h = w0[:, 0:1] * x[0:1, :] + w0[:, 1:2] * x[1:2, :] + b0
    h = _leaky_relu(h)                                   # (20, TB)

    # Layer 1 (20x20) and layer 2 (10x20): MXU matmuls, f32 accumulation.
    w1 = p_ref[24:44, 0:20]                              # (20, 20)
    b1 = p_ref[24:44, 20:21]                             # (20, 1)
    h = jnp.dot(w1, h, preferred_element_type=jnp.float32) + b1
    h = _leaky_relu(h)                                   # (20, TB)

    w2 = p_ref[48:58, 0:20]                              # (10, 20)
    b2 = p_ref[48:58, 20:21]                             # (10, 1)
    h = jnp.dot(w2, h, preferred_element_type=jnp.float32) + b2
    h = _leaky_relu(h)                                   # (10, TB)

    # Layer 3 (N=1): broadcast-multiply + cross-sublane reduce (VPU + XLU).
    w3t = p_ref[64:74, 0:1]                              # (10, 1)
    b3 = p_ref[64:65, 1:2]                               # (1, 1)
    out = jnp.sum(w3t * h, axis=0, keepdims=True) + b3
    o_ref[...] = out.astype(o_ref.dtype)                 # (1, TB), unmasked store


def _pack_params(params):
    """Pack torch-style (W (out,in), b (out,)) params into one f32 slab."""
    (w0, b0), (w1, b1), (w2, b2), (w3, b3) = params
    p = jnp.zeros((P_ROWS, P_COLS), jnp.float32)
    p = p.at[0:20, 0:2].set(w0)
    p = p.at[0:20, 2:3].set(b0.reshape(20, 1))
    p = p.at[24:44, 0:20].set(w1)
    p = p.at[24:44, 20:21].set(b1.reshape(20, 1))
    p = p.at[48:58, 0:20].set(w2)
    p = p.at[48:58, 20:21].set(b2.reshape(10, 1))
    p = p.at[64:74, 0:1].set(w3.T)
    p = p.at[64:65, 1:2].set(b3.reshape(1, 1))
    return p


def _choose_grid(batch, max_tile=MAX_BATCH_TILE, target_steps=TARGET_STEPS):
    """Pick a lane-aligned batch tile giving >= target_steps (even) grid steps
    when the batch is large enough, capped at max_tile."""
    lane_groups = pl.cdiv(batch, LANE)               # 128-lane groups needed
    max_groups_per_tile = max_tile // LANE
    min_steps = pl.cdiv(lane_groups, max_groups_per_tile)
    steps = max(min_steps, min(target_steps, lane_groups))
    if steps > 1 and steps % 2 == 1:
        steps += 1                                    # even count for v7x 2-TC
    groups_per_tile = pl.cdiv(lane_groups, steps)
    tb = groups_per_tile * LANE
    padded = steps * tb
    return tb, padded, steps


def _nn_forward_impl(x, params):
    """x: (batch, IN_SIZE).  params: list of torch-style (W (out,in), b (out,))."""
    batch = x.shape[0]
    tb, padded, steps = _choose_grid(batch)

    p_buf = _pack_params(params)

    # (batch, 2) -> (2, padded): batch moves onto the 128-lane axis.
    # Single pad of the transpose (fused under jit) -- no zeros+scatter pass.
    x_t = jnp.pad(x.T, ((0, 0), (0, padded - batch)))

    out_t = pl.pallas_call(
        mlp_kernel,
        out_shape=jax.ShapeDtypeStruct((OUT_SIZE, padded), jnp.float32),
        grid=(steps,),
        in_specs=[
            # x tile: pipelined over the batch grid axis.
            pl.BlockSpec((IN_SIZE, tb), lambda i: (0, i)),
            # Packed params: full-array block, constant index_map ->
            # DMA'd once, VMEM-resident across all grid steps.
            pl.BlockSpec((P_ROWS, P_COLS), lambda i: (0, 0)),
        ],
        out_specs=pl.BlockSpec((OUT_SIZE, tb), lambda i: (0, i)),
        compiler_params=pltpu.CompilerParams(
            dimension_semantics=("parallel",)),
    )(x_t, p_buf)

    # (1, padded) -> (batch, 1): row slice + reshape (layout-identical),
    # no output transpose pass.
    return out_t[0, :batch][:, None]


nn_forward = jax.jit(_nn_forward_impl)


def init_params(key):
    """Deterministic init matching torch.nn.Linear (uniform +-1/sqrt(fan_in)),
    stored torch-style: W is (out, in), b is (out,)."""
    dims = [IN_SIZE] + LAYERS + [OUT_SIZE]
    params = []
    for i in range(len(dims) - 1):
        fan_in, fan_out = dims[i], dims[i + 1]
        key, kw, kb = jax.random.split(key, 3)
        bound = 1.0 / math.sqrt(fan_in)
        w = jax.random.uniform(kw, (fan_out, fan_in), jnp.float32, -bound, bound)
        b = jax.random.uniform(kb, (fan_out,), jnp.float32, -bound, bound)
        params.append((w, b))
    return params


def reference_forward(x, params):
    """Pure-JAX reference (canonical (batch, features) layout)."""
    w, b = params[0]
    h = x @ w.T + b
    for w, b in params[1:]:
        h = _leaky_relu(h)
        h = h @ w.T + b
    return h


if __name__ == "__main__":
    key = jax.random.PRNGKey(0)
    key, kx = jax.random.split(key)
    params = init_params(key)

    # Matches the script's `x = torch.randn(size=(10, 2))`.
    x_small = jax.random.normal(kx, (10, IN_SIZE), dtype=jnp.float32)
    out_small = jax.block_until_ready(nn_forward(x_small, params))
    ref_small = reference_forward(x_small, params)
    assert out_small.shape == (10, OUT_SIZE)
    assert jnp.allclose(out_small, ref_small, atol=1e-4, rtol=1e-4)

    # Larger batch exercises the multi-step (even, >=4 step) grid + padding path.
    key, kx2 = jax.random.split(key)
    x_big = jax.random.normal(kx2, (1000, IN_SIZE), dtype=jnp.float32)
    out_big = jax.block_until_ready(nn_forward(x_big, params))
    ref_big = reference_forward(x_big, params)
    assert out_big.shape == (1000, OUT_SIZE)
    assert jnp.allclose(out_big, ref_big, atol=1e-4, rtol=1e-4)

    print("KERNEL_OK")
</pallas_src>

<mosaic_0001>
module attributes {stable_mosaic.version = 11 : i64} {
  func.func @mlp_kernel(%arg0: i32, %arg1: memref<2x128xf32, #tpu.memory_space<vmem>>, %arg2: memref<80x32xf32, #tpu.memory_space<vmem>>, %arg3: memref<1x128xf32, #tpu.memory_space<vmem>>) attributes {dimension_semantics = [#tpu.dimension_semantics<parallel>], iteration_bounds = array<i64: 1>, scalar_prefetch = 0 : i64, scratch_operands = 0 : i64, tpu.core_type = #tpu.core_type<tc>, window_params = [{transform_indices = @transform_0, window_bounds = array<i64: 2, 128>}, {pipeline_mode = #tpu.pipeline_mode<synchronous>, transform_indices = @transform_1, window_bounds = array<i64: 80, 32>}, {transform_indices = @transform_2, window_bounds = array<i64: 1, 128>}]} {
    %c0 = arith.constant 0 : index
    %c0_0 = arith.constant 0 : index
    %0 = vector.load %arg1[%c0, %c0_0] : memref<2x128xf32, #tpu.memory_space<vmem>>, vector<2x128xf32>
    %c0_1 = arith.constant 0 : index
    %c0_2 = arith.constant 0 : index
    %1 = vector.load %arg2[%c0_1, %c0_2] : memref<80x32xf32, #tpu.memory_space<vmem>>, vector<20x2xf32>
    %c0_3 = arith.constant 0 : index
    %c2 = arith.constant 2 : index
    %2 = vector.load %arg2[%c0_3, %c2] : memref<80x32xf32, #tpu.memory_space<vmem>>, vector<20x1xf32>
    %3 = vector.extract_strided_slice %1 {offsets = [0, 0], sizes = [20, 1], strides = [1, 1]} : vector<20x2xf32> to vector<20x1xf32>
    %4 = vector.extract_strided_slice %0 {offsets = [0, 0], sizes = [1, 128], strides = [1, 1]} : vector<2x128xf32> to vector<1x128xf32>
    %5 = vector.broadcast %3 : vector<20x1xf32> to vector<20x128xf32>
    %6 = vector.broadcast %4 : vector<1x128xf32> to vector<20x128xf32>
    %7 = arith.mulf %5, %6 : vector<20x128xf32>
    %8 = vector.extract_strided_slice %1 {offsets = [0, 1], sizes = [20, 1], strides = [1, 1]} : vector<20x2xf32> to vector<20x1xf32>
    %9 = vector.extract_strided_slice %0 {offsets = [1, 0], sizes = [1, 128], strides = [1, 1]} : vector<2x128xf32> to vector<1x128xf32>
    %10 = vector.broadcast %8 : vector<20x1xf32> to vector<20x128xf32>
    %11 = vector.broadcast %9 : vector<1x128xf32> to vector<20x128xf32>
    %12 = arith.mulf %10, %11 : vector<20x128xf32>
    %13 = arith.addf %7, %12 : vector<20x128xf32>
    %14 = vector.broadcast %2 : vector<20x1xf32> to vector<20x128xf32>
    %15 = arith.addf %13, %14 : vector<20x128xf32>
    %cst = arith.constant 0.000000e+00 : f32
    %16 = vector.broadcast %cst : f32 to vector<20x128xf32>
    %17 = arith.cmpf oge, %15, %16 : vector<20x128xf32>
    %cst_4 = arith.constant 0.00999999977 : f32
    %18 = vector.broadcast %cst_4 : f32 to vector<20x128xf32>
    %19 = arith.mulf %18, %15 : vector<20x128xf32>
    %20 = arith.select %17, %15, %19 : vector<20x128xi1>, vector<20x128xf32>
    %c24 = arith.constant 24 : index
    %c0_5 = arith.constant 0 : index
    %21 = vector.load %arg2[%c24, %c0_5] : memref<80x32xf32, #tpu.memory_space<vmem>>, vector<20x20xf32>
    %c24_6 = arith.constant 24 : index
    %c20 = arith.constant 20 : index
    %22 = vector.load %arg2[%c24_6, %c20] : memref<80x32xf32, #tpu.memory_space<vmem>>, vector<20x1xf32>
    %cst_7 = arith.constant dense<0.000000e+00> : vector<20x128xf32>
    %23 = tpu.matmul %21, %20, %cst_7 {dimension_numbers = #tpu.dot_dimension_numbers<[1], [0], [0], [1], [0, 0, 1, 1], [], []>} : vector<20x20xf32>, vector<20x128xf32>, vector<20x128xf32> -> vector<20x128xf32>
    %24 = vector.broadcast %22 : vector<20x1xf32> to vector<20x128xf32>
    %25 = arith.addf %23, %24 : vector<20x128xf32>
    %cst_8 = arith.constant 0.000000e+00 : f32
    %26 = vector.broadcast %cst_8 : f32 to vector<20x128xf32>
    %27 = arith.cmpf oge, %25, %26 : vector<20x128xf32>
    %cst_9 = arith.constant 0.00999999977 : f32
    %28 = vector.broadcast %cst_9 : f32 to vector<20x128xf32>
    %29 = arith.mulf %28, %25 : vector<20x128xf32>
    %30 = arith.select %27, %25, %29 : vector<20x128xi1>, vector<20x128xf32>
    %c48 = arith.constant 48 : index
    %c0_10 = arith.constant 0 : index
    %31 = vector.load %arg2[%c48, %c0_10] : memref<80x32xf32, #tpu.memory_space<vmem>>, vector<10x20xf32>
    %c48_11 = arith.constant 48 : index
    %c20_12 = arith.constant 20 : index
    %32 = vector.load %arg2[%c48_11, %c20_12] : memref<80x32xf32, #tpu.memory_space<vmem>>, vector<10x1xf32>
    %cst_13 = arith.constant dense<0.000000e+00> : vector<10x128xf32>
    %33 = tpu.matmul %31, %30, %cst_13 {dimension_numbers = #tpu.dot_dimension_numbers<[1], [0], [0], [1], [0, 0, 1, 1], [], []>} : vector<10x20xf32>, vector<20x128xf32>, vector<10x128xf32> -> vector<10x128xf32>
    %34 = vector.broadcast %32 : vector<10x1xf32> to vector<10x128xf32>
    %35 = arith.addf %33, %34 : vector<10x128xf32>
    %cst_14 = arith.constant 0.000000e+00 : f32
    %36 = vector.broadcast %cst_14 : f32 to vector<10x128xf32>
    %37 = arith.cmpf oge, %35, %36 : vector<10x128xf32>
    %cst_15 = arith.constant 0.00999999977 : f32
    %38 = vector.broadcast %cst_15 : f32 to vector<10x128xf32>
    %39 = arith.mulf %38, %35 : vector<10x128xf32>
    %40 = arith.select %37, %35, %39 : vector<10x128xi1>, vector<10x128xf32>
    %c64 = arith.constant 64 : index
    %c0_16 = arith.constant 0 : index
    %41 = vector.load %arg2[%c64, %c0_16] : memref<80x32xf32, #tpu.memory_space<vmem>>, vector<10x1xf32>
    %c64_17 = arith.constant 64 : index
    %c1 = arith.constant 1 : index
    %42 = vector.load %arg2[%c64_17, %c1] : memref<80x32xf32, #tpu.memory_space<vmem>>, vector<1x1xf32>
    %43 = vector.broadcast %41 : vector<10x1xf32> to vector<10x128xf32>
    %44 = arith.mulf %43, %40 : vector<10x128xf32>
    %cst_18 = arith.constant dense<0.000000e+00> : vector<128xf32>
    %45 = vector.multi_reduction <add>, %44, %cst_18 [0] : vector<10x128xf32> to vector<128xf32>
    %46 = vector.shape_cast %45 : vector<128xf32> to vector<1x128xf32>
    %47 = vector.broadcast %42 : vector<1x1xf32> to vector<1x128xf32>
    %48 = arith.addf %46, %47 : vector<1x128xf32>
    %c0_19 = arith.constant 0 : index
    %c0_20 = arith.constant 0 : index
    %49 = vector.load %arg3[%c0_19, %c0_20] : memref<1x128xf32, #tpu.memory_space<vmem>>, vector<1x128xf32>
    tpu.vector_store %arg3[%c0_19, %c0_20], %48 {strides = array<i32>} : memref<1x128xf32, #tpu.memory_space<vmem>>, vector<1x128xf32>,
    return
  }
  func.func @transform_0(%arg0: i32) -> (i32, i32) {
    %c0_i32 = arith.constant 0 : i32
    %c0_i32_0 = arith.constant 0 : i32
    return %c0_i32, %arg0 : i32, i32
  }
  func.func @transform_1(%arg0: i32) -> (i32, i32) {
    %c0_i32 = arith.constant 0 : i32
    %c0_i32_0 = arith.constant 0 : i32
    %c0_i32_1 = arith.constant 0 : i32
    return %c0_i32, %c0_i32_0 : i32, i32
  }
  func.func @transform_2(%arg0: i32) -> (i32, i32) {
    %c0_i32 = arith.constant 0 : i32
    %c0_i32_0 = arith.constant 0 : i32
    return %c0_i32, %arg0 : i32, i32
  }
}

</mosaic_0001>

<llo_original>
// kernel: _nn_forward_impl.1
$region0: #{_nn_forward_impl.1}
  #allocation0 [shape = 'u32[]', space=smem, size = 0x4, offset = 0x4, fixed_abs, tag = 'smem constant byte address 0x4 - core index']
  #allocation1 [shape = 'u32[72,128]{1,0:T(1,128)}', space=vmem, size = 0x9000, scoped, tag = 'internal scratch']
  %s0 = inlined_call_operand.vmem [shape: f32[2,128], index: 0, kind: input, shape index: {}]
  %s1 = inlined_call_operand.vmem [shape: f32[80,32], index: 1, kind: input, shape index: {}]
  %s2 = inlined_call_operand.vmem [shape: f32[1,128], index: 2, kind: output, shape index: {}]
  %s3 = sld [smem:[#allocation0]]
  $region18: #{_nn_forward_impl.1} parent=0
    _
  %s5 = ssub.s32 1, %s3
  %s6 = scalar_select 0, %s5, %s3
  // Predicated region
  $region2: #{_nn_forward_impl.1} parent=0 // pred_check
    _
  $region3: #{_nn_forward_impl.1} parent=0 // pred_check_branch
    %8 = sbr.rel (0) target = $region5
  $region4: #{_nn_forward_impl.1} parent=0 // pred_region
    _
  $region5: #{_nn_forward_impl.1} parent=0 // pred_fallthru
    _
  // Predicated region
  $region6: #{_nn_forward_impl.1} parent=0 // pred_check
    _
  $region7: #{_nn_forward_impl.1} parent=0 // pred_check_branch
    %10 = sbr.rel (0) target = $region9
  $region8: #{_nn_forward_impl.1} parent=0 // pred_region
    _
  $region9: #{_nn_forward_impl.1} parent=0 // pred_fallthru
    _
  %v11 = vld [vmem:[%s0] sm:$0x3]
  %v12 = vld [vmem:[%s1] sm:$0xff]
  %v13 = vld [vmem:[%s1 + $0x8] sm:$0xff]
  %v14 = vld [vmem:[%s1 + $0x10] sm:$0xf]
  %16 = vset.pattern.permute.xlu0 0
  %17 = vperm.xlu0 %16, %v12
  %v18 = vpop.permute.xlu0 %17
  %21 = vset.pattern.permute.xlu0 0
  %22 = vperm.xlu0 %21, %v13
  %v23 = vpop.permute.xlu0 %22
  %26 = vset.pattern.permute.xlu0 0
  %27 = vperm.xlu0 %26, %v14
  %v28 = vpop.permute.xlu0 %27
  %v30 = vperm.slane %v11, 0
  %v31 = vmul.f32 %v18, %v30
  %v32 = vmul.f32 %v23, %v30
  %v33 = vmul.f32 %v28, %v30
  %34 = vset.pattern.permute.xlu0 1
  %35 = vperm.xlu0 %34, %v12
  %v36 = vpop.permute.xlu0 %35
  %38 = vset.pattern.permute.xlu0 1
  %39 = vperm.xlu0 %38, %v13
  %v40 = vpop.permute.xlu0 %39
  %42 = vset.pattern.permute.xlu0 1
  %43 = vperm.xlu0 %42, %v14
  %v44 = vpop.permute.xlu0 %43
  %v46 = vperm.slane %v11, 1
  %v47 = vmul.f32 %v36, %v46
  %v48 = vmul.f32 %v40, %v46
  %v49 = vmul.f32 %v44, %v46
  %v50 = vadd.f32 %v31, %v47
  %v51 = vadd.f32 %v32, %v48
  %v52 = vadd.f32 %v33, %v49
  %53 = vset.pattern.permute.xlu0 2
  %54 = vperm.xlu0 %53, %v12
  %v55 = vpop.permute.xlu0 %54
  %57 = vset.pattern.permute.xlu0 2
  %58 = vperm.xlu0 %57, %v13
  %v59 = vpop.permute.xlu0 %58
  %61 = vset.pattern.permute.xlu0 2
  %62 = vperm.xlu0 %61, %v14
  %v63 = vpop.permute.xlu0 %62
  %v65 = vadd.f32 %v50, %v55
  %v66 = vadd.f32 %v51, %v59
  %v67 = vadd.f32 %v52, %v63
  %vm68 = vcmp.ge.f32.partialorder %v65, 0.0
  %vm69 = vcmp.ge.f32.partialorder %v66, 0.0
  %vm70 = vcmp.ge.f32.partialorder %v67, 0.0
  %v71 = vmul.f32 %v65, 0.01
  %v72 = vmul.f32 %v66, 0.01
  %v73 = vmul.f32 %v67, 0.01
  %v74 = vsel %vm68, %v65, %v71
  %v75 = vsel %vm69, %v66, %v72
  %v76 = vsel %vm70, %v67, %v73
  %v77 = vld [vmem:[%s1 + $0x18] sm:$0xff]
  %v78 = vld [vmem:[%s1 + $0x20] sm:$0xff]
  %v79 = vld [vmem:[%s1 + $0x28] sm:$0xf]
  %81 = vset.pattern.permute.xlu0 20
  %82 = vperm.xlu0 %81, %v77
  %v83 = vpop.permute.xlu0 %82
  %86 = vset.pattern.permute.xlu0 20
  %87 = vperm.xlu0 %86, %v78
  %v88 = vpop.permute.xlu0 %87
  %91 = vset.pattern.permute.xlu0 20
  %92 = vperm.xlu0 %91, %v79
  %v93 = vpop.permute.xlu0 %92
  %vm95 = vcmask 162816
  %v96 = vsel %vm95, %v77, 0
  %v98 = vsel %vm95, %v78, 0
  %v100 = vsel %vm95, %v79, 0
  %vm102 = vcmask 1043456
  %v104 = vsel %vm102, %v76, 0
  %106 = vmatpush.msra.mxu0 0.0
  %107 = vmatpush.msra.mxu0 0.0
  %108 = vmatpush.msra.mxu0 0.0
  %109 = vmatpush.msra.mxu0 0.0
  %110 = vmatpush.msra.mxu0 0.0
  %111 = vmatpush.msra.mxu0 0.0
  %112 = vmatpush.msra.mxu0 0.0
  %113 = vmatpush.msra.mxu0 0.0
  %114 = vmatpush.msra.mxu0 0.0
  %115 = vmatpush.msra.mxu0 0.0
  %116 = vmatpush.msra.mxu0 0.0
  %117 = vmatpush.msra.mxu0 0.0
  %118 = vmatpush.msra.mxu0 0.0
  %119 = vmatpush.msra.mxu0 %v104
  %120 = vmatpush.msra.mxu0 %v75
  %121 = vmatpush.msra.mxu0 %v74
  %122 = vmatmul.f32.gmra.mxu0 %v96
  %v123 = vpop.f32.mrf.mxu0
  %v124 = vadd.f32 %v83, %v123
  %125 = vmatmul.f32.gmra.mxu0 %v98
  %v126 = vpop.f32.mrf.mxu0
  %v127 = vadd.f32 %v88, %v126
  %128 = vmatmul.f32.gmra.mxu0 %v100
  %v129 = vpop.f32.mrf.mxu0
  %v130 = vadd.f32 %v93, %v129
  %131 = vdwg.mxu0
  %vm132 = vcmp.ge.f32.partialorder %v124, 0.0
  %vm133 = vcmp.ge.f32.partialorder %v127, 0.0
  %vm134 = vcmp.ge.f32.partialorder %v130, 0.0
  %v135 = vmul.f32 %v124, 0.01
  %v136 = vmul.f32 %v127, 0.01
  %v137 = vmul.f32 %v130, 0.01
  %v138 = vsel %vm132, %v124, %v135
  %v139 = vsel %vm133, %v127, %v136
  %v140 = vsel %vm134, %v130, %v137
  %v141 = vld [vmem:[%s1 + $0x30] sm:$0xff]
  %v142 = vld [vmem:[%s1 + $0x38] sm:$0x3]
  %144 = vset.pattern.permute.xlu0 20
  %145 = vperm.xlu0 %144, %v141
  %v146 = vpop.permute.xlu0 %145
  %149 = vset.pattern.permute.xlu0 20
  %150 = vperm.xlu0 %149, %v142
  %v151 = vpop.permute.xlu0 %150
  %v153 = vsel %vm95, %v141, 0
  %v155 = vsel %vm95, %v142, 0
  %v158 = vsel %vm102, %v140, 0
  %160 = vmatpush.msra.mxu0 0.0
  %161 = vmatpush.msra.mxu0 0.0
  %162 = vmatpush.msra.mxu0 0.0
  %163 = vmatpush.msra.mxu0 0.0
  %164 = vmatpush.msra.mxu0 0.0
  %165 = vmatpush.msra.mxu0 0.0
  %166 = vmatpush.msra.mxu0 0.0
  %167 = vmatpush.msra.mxu0 0.0
  %168 = vmatpush.msra.mxu0 0.0
  %169 = vmatpush.msra.mxu0 0.0
  %170 = vmatpush.msra.mxu0 0.0
  %171 = vmatpush.msra.mxu0 0.0
  %172 = vmatpush.msra.mxu0 0.0
  %173 = vmatpush.msra.mxu0 %v158
  %174 = vmatpush.msra.mxu0 %v139
  %175 = vmatpush.msra.mxu0 %v138
  %176 = vmatmul.f32.gmra.mxu0 %v153
  %v177 = vpop.f32.mrf.mxu0
  %v178 = vadd.f32 %v146, %v177
  %179 = vmatmul.f32.gmra.mxu0 %v155
  %v180 = vpop.f32.mrf.mxu0
  %v181 = vadd.f32 %v151, %v180
  %182 = vdwg.mxu0
  %vm183 = vcmp.ge.f32.partialorder %v178, 0.0
  %vm184 = vcmp.ge.f32.partialorder %v181, 0.0
  %v185 = vmul.f32 %v178, 0.01
  %v186 = vmul.f32 %v181, 0.01
  %v187 = vsel %vm183, %v178, %v185
  %v188 = vsel %vm184, %v181, %v186
  %v189 = vld [vmem:[%s1 + $0x40] sm:$0xff]
  %v190 = vld [vmem:[%s1 + $0x48] sm:$0x3]
  %v191 = vld [vmem:[%s1 + $0x40] sm:$0x1]
  %193 = vset.pattern.permute.xlu0 0
  %194 = vperm.xlu0 %193, %v189
  %v195 = vpop.permute.xlu0 %194
  %198 = vset.pattern.permute.xlu0 0
  %199 = vperm.xlu0 %198, %v190
  %v200 = vpop.permute.xlu0 %199
  %v202 = vmul.f32 %v195, %v187
  %v203 = vmul.f32 %v200, %v188
  %vm204 = vcmask 1041408
  %v205 = vsel %vm204, %v203, 0.0
  %v206 = vadd.f32 %v202, %v205
  %v207 = vrot.slane %v206, 4
  %v208 = vadd.f32 %v206, %v207
  %v209 = vrot.slane %v208, 2
  %v210 = vadd.f32 %v208, %v209
  %v211 = vrot.slane %v210, 1
  %v212 = vadd.f32 %v210, %v211
  %214 = vset.pattern.permute.xlu0 1
  %215 = vperm.xlu0 %214, %v191
  %v216 = vpop.permute.xlu0 %215
  %v218 = vadd.f32 %v212, %v216
  %219 = vst [vmem:[%s2] sm:$0x1] %v218
  // Predicated region
  $region10: #{_nn_forward_impl.1} parent=0 // pred_check
    _
  $region11: #{_nn_forward_impl.1} parent=0 // pred_check_branch
    %221 = sbr.rel (0) target = $region13
  $region12: #{_nn_forward_impl.1} parent=0 // pred_region
    _
  $region13: #{_nn_forward_impl.1} parent=0 // pred_fallthru
    _
  // Predicated region
  $region14: #{_nn_forward_impl.1} parent=0 // pred_check
    _
  $region15: #{_nn_forward_impl.1} parent=0 // pred_check_branch
    %223 = sbr.rel (0) target = $region17
  $region16: #{_nn_forward_impl.1} parent=0 // pred_region
    _
  $region17: #{_nn_forward_impl.1} parent=0 // pred_fallthru
    _

</llo_original>
